<compile_context>
chip_gen: v5e
topology: v5e:2x2
jax: 0.10.0
libtpu: 0.0.40
codegen_flags: <defaults>
</compile_context>

<pallas_src>
import functools
import math

import jax
import jax.numpy as jnp
from jax.experimental import pallas as pl
from jax.experimental.pallas import tpu as pltpu


def tcn_bn_kernel(x_ref, w_ref, b_ref, o_ref, *, K, pad, V, T_out):
    """Fused temporal conv (kernel (K,1), stride 1) + folded BatchNorm2d.

    x_ref: (Cin, T*V)      one batch element, NCHW with (T, V) flattened into lanes
    w_ref: (Cout, K*Cin)   BN-folded conv weights, columns ordered (k, cin)
    b_ref: (Cout, 1)       BN-folded bias
    o_ref: (Cout, T_out*V) output, NCHW order with (T, V) flattened into lanes
    """
    cin = x_ref.shape[0]
    x = x_ref[...]

    # Zero-pad the temporal halo in VMEM (no HBM pad pass in the wrapper).
    if pad > 0:
        halo = jnp.zeros((cin, pad * V), x.dtype)
        xp = jnp.concatenate([halo, x, halo], axis=1)        # (Cin, (T+2*pad)*V)
    else:
        xp = x

    # im2col along time: x_col[k*Cin + c, t*V + v] = x_padded[c, t + k, v]
    x_col = jnp.concatenate(
        [xp[:, k * V:k * V + T_out * V] for k in range(K)], axis=0)  # (K*Cin, T_out*V)

    # Single MXU matmul, f32 accumulate; BN already folded into w/b.
    y = jnp.dot(w_ref[...], x_col, preferred_element_type=jnp.float32)
    o_ref[...] = (y + b_ref[...]).astype(o_ref.dtype)


def unit_tcn_skip_forward(x_nchw, w_oik1, b, gamma, beta, run_mean, run_var,
                          kernel_size=9, stride=1, eps=1e-5,
                          compute_dtype=jnp.float32):
    """x_nchw: (N, Cin, T, V), w_oik1: (Cout, Cin, K, 1). Returns (N, Cout, T_out, V)."""
    assert stride == 1, "only stride=1 (the module default) is implemented"  # TODO(synk)
    N, Cin, T, V = x_nchw.shape
    Cout = w_oik1.shape[0]
    K = kernel_size
    pad = (K - 1) // 2              # == int((kernel_size - 1) / 2) in the PyTorch module
    T_out = T + 2 * pad - K + 1     # stride 1

    # ---- Fold BatchNorm2d (inference) + conv bias into the weights (wrapper-side) ----
    inv = (gamma * jax.lax.rsqrt(run_var.astype(jnp.float32) + eps)).astype(jnp.float32)
    # Column ordering (k, cin): w_col[o, k*Cin + c] = w[o, c, k]
    w_col = jnp.transpose(w_oik1[..., 0], (0, 2, 1)).reshape(Cout, K * Cin)
    w_fold = (w_col * inv[:, None]).astype(compute_dtype)
    b_fold = ((b - run_mean) * inv + beta).reshape(Cout, 1).astype(jnp.float32)

    # NCHW stays NCHW; flattening (T, V) into the lane dim is metadata-only.
    x2 = x_nchw.reshape(N, Cin, T * V).astype(compute_dtype)

    kernel = functools.partial(tcn_bn_kernel, K=K, pad=pad, V=V, T_out=T_out)

    out2 = pl.pallas_call(
        kernel,
        out_shape=jax.ShapeDtypeStruct((N, Cout, T_out * V), jnp.float32),
        grid=(N,),
        in_specs=[
            pl.BlockSpec((None, Cin, T * V), lambda n: (n, 0, 0)),   # per-batch block
            pl.BlockSpec((Cout, K * Cin), lambda n: (0, 0)),         # weights (resident)
            pl.BlockSpec((Cout, 1), lambda n: (0, 0)),               # folded bias
        ],
        out_specs=pl.BlockSpec((None, Cout, T_out * V), lambda n: (n, 0, 0)),
        compiler_params=pltpu.CompilerParams(
            dimension_semantics=("parallel",),
            vmem_limit_bytes=32 * 1024 * 1024,
        ),
    )(x2, w_fold, b_fold)

    # Metadata-only reshape back to (N, Cout, T_out, V); no transpose needed.
    return out2.reshape(N, Cout, T_out, V)


def reference_forward(x_nchw, w_oik1, b, gamma, beta, run_mean, run_var,
                      kernel_size=9, stride=1):
    """Pure-JAX reference (matches PyTorch Conv2d + BatchNorm2d eval)."""
    K = kernel_size
    pad = (K - 1) // 2
    Cout = w_oik1.shape[0]
    y = jax.lax.conv_general_dilated(
        x_nchw, w_oik1, window_strides=(stride, 1),
        padding=((pad, pad), (0, 0)),
        dimension_numbers=('NCHW', 'OIHW', 'NCHW'))
    y = y + b.reshape(1, Cout, 1, 1)
    eps = 1e-5
    g = gamma.reshape(1, Cout, 1, 1)
    bt = beta.reshape(1, Cout, 1, 1)
    m = run_mean.reshape(1, Cout, 1, 1)
    v = run_var.reshape(1, Cout, 1, 1)
    return g * (y - m) / jnp.sqrt(v + eps) + bt


if __name__ == "__main__":
    # Small shapes consistent with the module (NCHW = (N, Cin, T, V))
    N, Cin, Cout, T, V = 2, 4, 8, 16, 16
    K, stride = 9, 1

    key = jax.random.PRNGKey(0)
    kx, kw = jax.random.split(key)

    x = jax.random.normal(kx, (N, Cin, T, V), dtype=jnp.float32)

    # conv_init: kaiming_normal_(mode='fan_out') -> std = sqrt(2 / (Cout*K*1)); bias = 0
    fan_out = Cout * K * 1
    w = jax.random.normal(kw, (Cout, Cin, K, 1), dtype=jnp.float32) * math.sqrt(2.0 / fan_out)
    b = jnp.zeros((Cout,), jnp.float32)

    # bn_init(bn, 1): weight=1, bias=0; fresh running stats: mean=0, var=1 (eval-mode BN)
    gamma = jnp.ones((Cout,), jnp.float32)
    beta = jnp.zeros((Cout,), jnp.float32)
    run_mean = jnp.zeros((Cout,), jnp.float32)
    run_var = jnp.ones((Cout,), jnp.float32)

    out = unit_tcn_skip_forward(x, w, b, gamma, beta, run_mean, run_var,
                                kernel_size=K, stride=stride)
    out = jax.block_until_ready(out)

    ref = reference_forward(x, w, b, gamma, beta, run_mean, run_var,
                            kernel_size=K, stride=stride)

    assert out.shape == (N, Cout, T, V), out.shape
    err = float(jnp.abs(out - ref).max())
    assert jnp.allclose(out, ref, rtol=5e-5, atol=5e-5), err

    print("KERNEL_OK")
</pallas_src>

<mosaic_0001>
module attributes {stable_mosaic.version = 11 : i64} {
  func.func @tcn_bn_kernel(%arg0: i32, %arg1: memref<1x4x256xf32, #tpu.memory_space<vmem>>, %arg2: memref<8x36xf32, #tpu.memory_space<vmem>>, %arg3: memref<8x1xf32, #tpu.memory_space<vmem>>, %arg4: memref<1x8x256xf32, #tpu.memory_space<vmem>>) attributes {dimension_semantics = [#tpu.dimension_semantics<parallel>], iteration_bounds = array<i64: 2>, scalar_prefetch = 0 : i64, scratch_operands = 0 : i64, tpu.core_type = #tpu.core_type<tc>, window_params = [{transform_indices = @transform_0, window_bounds = array<i64: 1, 4, 256>}, {pipeline_mode = #tpu.pipeline_mode<synchronous>, transform_indices = @transform_1, window_bounds = array<i64: 8, 36>}, {pipeline_mode = #tpu.pipeline_mode<synchronous>, transform_indices = @transform_2, window_bounds = array<i64: 8, 1>}, {transform_indices = @transform_3, window_bounds = array<i64: 1, 8, 256>}]} {
    %c0 = arith.constant 0 : index
    %c0_0 = arith.constant 0 : index
    %c0_1 = arith.constant 0 : index
    %0 = vector.load %arg1[%c0, %c0_0, %c0_1] : memref<1x4x256xf32, #tpu.memory_space<vmem>>, vector<1x4x256xf32>
    %1 = vector.shape_cast %0 : vector<1x4x256xf32> to vector<4x256xf32>
    %cst = arith.constant 0.000000e+00 : f32
    %2 = vector.broadcast %cst : f32 to vector<4x64xf32>
    %3 = tpu.concatenate %2, %1, %2 in 1 : vector<4x64xf32>, vector<4x256xf32>, vector<4x64xf32> -> vector<4x384xf32>
    %4 = vector.extract_strided_slice %3 {offsets = [0, 0], sizes = [4, 256], strides = [1, 1]} : vector<4x384xf32> to vector<4x256xf32>
    %5 = vector.extract_strided_slice %3 {offsets = [0, 16], sizes = [4, 256], strides = [1, 1]} : vector<4x384xf32> to vector<4x256xf32>
    %6 = vector.extract_strided_slice %3 {offsets = [0, 32], sizes = [4, 256], strides = [1, 1]} : vector<4x384xf32> to vector<4x256xf32>
    %7 = vector.extract_strided_slice %3 {offsets = [0, 48], sizes = [4, 256], strides = [1, 1]} : vector<4x384xf32> to vector<4x256xf32>
    %8 = vector.extract_strided_slice %3 {offsets = [0, 64], sizes = [4, 256], strides = [1, 1]} : vector<4x384xf32> to vector<4x256xf32>
    %9 = vector.extract_strided_slice %3 {offsets = [0, 80], sizes = [4, 256], strides = [1, 1]} : vector<4x384xf32> to vector<4x256xf32>
    %10 = vector.extract_strided_slice %3 {offsets = [0, 96], sizes = [4, 256], strides = [1, 1]} : vector<4x384xf32> to vector<4x256xf32>
    %11 = vector.extract_strided_slice %3 {offsets = [0, 112], sizes = [4, 256], strides = [1, 1]} : vector<4x384xf32> to vector<4x256xf32>
    %12 = vector.extract_strided_slice %3 {offsets = [0, 128], sizes = [4, 256], strides = [1, 1]} : vector<4x384xf32> to vector<4x256xf32>
    %13 = tpu.concatenate %4, %5, %6, %7, %8, %9, %10, %11, %12 in 0 : vector<4x256xf32>, vector<4x256xf32>, vector<4x256xf32>, vector<4x256xf32>, vector<4x256xf32>, vector<4x256xf32>, vector<4x256xf32>, vector<4x256xf32>, vector<4x256xf32> -> vector<36x256xf32>
    %c0_2 = arith.constant 0 : index
    %c0_3 = arith.constant 0 : index
    %14 = vector.load %arg2[%c0_2, %c0_3] : memref<8x36xf32, #tpu.memory_space<vmem>>, vector<8x36xf32>
    %cst_4 = arith.constant dense<0.000000e+00> : vector<8x256xf32>
    %15 = tpu.matmul %14, %13, %cst_4 {dimension_numbers = #tpu.dot_dimension_numbers<[1], [0], [0], [1], [0, 0, 1, 1], [], []>} : vector<8x36xf32>, vector<36x256xf32>, vector<8x256xf32> -> vector<8x256xf32>
    %c0_5 = arith.constant 0 : index
    %c0_6 = arith.constant 0 : index
    %16 = vector.load %arg3[%c0_5, %c0_6] : memref<8x1xf32, #tpu.memory_space<vmem>>, vector<8x1xf32>
    %17 = vector.broadcast %16 : vector<8x1xf32> to vector<8x256xf32>
    %18 = arith.addf %15, %17 : vector<8x256xf32>
    %c0_7 = arith.constant 0 : index
    %c0_8 = arith.constant 0 : index
    %c0_9 = arith.constant 0 : index
    %19 = vector.load %arg4[%c0_7, %c0_8, %c0_9] : memref<1x8x256xf32, #tpu.memory_space<vmem>>, vector<1x8x256xf32>
    %20 = vector.shape_cast %19 : vector<1x8x256xf32> to vector<8x256xf32>
    %21 = vector.shape_cast %18 : vector<8x256xf32> to vector<1x8x256xf32>
    tpu.vector_store %arg4[%c0_7, %c0_8, %c0_9], %21 {strides = array<i32>} : memref<1x8x256xf32, #tpu.memory_space<vmem>>, vector<1x8x256xf32>,
    return
  }
  func.func @transform_0(%arg0: i32) -> (i32, i32, i32) {
    %c0_i32 = arith.constant 0 : i32
    %c0_i32_0 = arith.constant 0 : i32
    %c0_i32_1 = arith.constant 0 : i32
    return %arg0, %c0_i32, %c0_i32_0 : i32, i32, i32
  }
  func.func @transform_1(%arg0: i32) -> (i32, i32) {
    %c0_i32 = arith.constant 0 : i32
    %c0_i32_0 = arith.constant 0 : i32
    %c0_i32_1 = arith.constant 0 : i32
    return %c0_i32, %c0_i32_0 : i32, i32
  }
  func.func @transform_2(%arg0: i32) -> (i32, i32) {
    %c0_i32 = arith.constant 0 : i32
    %c0_i32_0 = arith.constant 0 : i32
    %c0_i32_1 = arith.constant 0 : i32
    return %c0_i32, %c0_i32_0 : i32, i32
  }
  func.func @transform_3(%arg0: i32) -> (i32, i32, i32) {
    %c0_i32 = arith.constant 0 : i32
    %c0_i32_0 = arith.constant 0 : i32
    %c0_i32_1 = arith.constant 0 : i32
    return %arg0, %c0_i32, %c0_i32_0 : i32, i32, i32
  }
}

</mosaic_0001>

<llo_original>
// kernel: tpu_custom_call.1
$region0: #{tpu_custom_call.1}
  #allocation0 [shape = 'u32[]', space=smem, size = 0x4, offset = 0x4, fixed_abs, tag = 'smem constant byte address 0x4 - core index']
  #allocation1 [shape = 'u32[72,128]{1,0:T(1,128)}', space=vmem, size = 0x9000, scoped, tag = 'internal scratch']
  %s0 = inlined_call_operand.hbm [shape: f32[2,4,256], index: 0, kind: input, shape index: {}]
  %s1 = inlined_call_operand.vmem [shape: f32[8,36], index: 1, kind: input, shape index: {}]
  %s2 = inlined_call_operand.vmem [shape: f32[8,1], index: 2, kind: input, shape index: {}]
  %s3 = inlined_call_operand.hbm [shape: f32[2,8,256], index: 3, kind: output, shape index: {}]
  %s4 = sld [smem:[#allocation0]]
  $region49: #{tpu_custom_call.1} parent=0
    _
  %s6 = ssub.s32 1, %s4
  %s7 = scalar_select 0, %s6, %s4
  $region1: #{tpu_custom_call.1} parent=0
    #allocation2 [shape = 'u8[8192]{0}', space=vmem, size = 0x2000, scoped, tag = 'input window, operand 0']
    #allocation3 [shape = 's32[2]{0}', space=sflag, size = 0x8, scoped, tag = 'scoped memory for tpu_custom_call.1']
    #allocation4 [shape = 's32[2]{0}', space=sflag, size = 0x8, scoped, tag = 'scoped memory for tpu_custom_call.1']
    #allocation5 [shape = 'u8[16384]{0}', space=vmem, size = 0x4000, scoped, tag = 'output window, operand 0']
    %8 = vsyncpa [#allocation3], 0
    %s9 = scalar_lea.sflag [#allocation3], 1
    %10 = vsyncpa %s9, 0
    %11 = vsyncpa [#allocation4], 0
    %s12 = scalar_lea.sflag [#allocation4], 1
    %13 = vsyncpa %s12, 0
    loop: start=0, step=1, limit=4
    $region2: #{tpu_custom_call.1} parent=1 // loop_pre_header
      _
    $region3: #{tpu_custom_call.1} parent=1 // loop_header
      %s15 = sphi 0, %s19
      %p16 = scmp.ge.s32.totalorder %s15, 4
      %s25 = sphi 0, %s27
      %s28 = sphi 0, %s25
      %s29 = sphi 0, %s28
      %s45 = sphi 0, %s29
      %s49 = sphi 0, %s49
      %s51 = sphi 0, %s49
      %s52 = sphi 0, %s51
      %s66 = sphi 0, %s52
      %s70 = sphi 0, %s70
      %s72 = sphi 0, %s70
      %s73 = sphi 0, %s72
      %s87 = sphi 0, %s73
      %s93 = sphi 0, %s95
      %s96 = sphi 0, %s93
      %s97 = sphi 0, %s96
      %s113 = sphi 0, %s97
    $region4: #{tpu_custom_call.1} parent=1 // loop_header_branch
      %18 = sbr.rel (%p16) target = $region8
    $region5: #{tpu_custom_call.1} parent=1 // loop_body
      %s20 = ssub.s32 %s15, 1
      %s21 = ssub.s32 %s15, 2
      %s22 = sadd.s32 %s15, 1
      %s23 = ssub.s32 %s15, %s22
      %p24 = scmp.eq.s32.totalorder %s23, 0
      %s26 = sadd.s32 %s25, 1
      %s27 = scalar_select %p24, %s25, %s26
      %p30 = pneg %p24
      %p31 = scmp.eq.s32.totalorder %s15, 1
      %p32 = por %p30, %p31
      %p33 = scmp.ne.s32.totalorder %s25, %s28
      %p34 = scmp.eq.s32.totalorder %s15, 0
      %p35 = por %p33, %p34
      %p36 = scmp.ne.s32.totalorder %s25, %s28
      %p37 = scmp.eq.s32.totalorder %s20, 1
      %p38 = por %p36, %p37
      %p39 = scmp.ne.s32.totalorder %s28, %s29
      %p40 = scmp.eq.s32.totalorder %s20, 0
      %p41 = por %p39, %p40
      %p42 = scmp.ne.s32.totalorder %s28, %s29
      %p43 = scmp.eq.s32.totalorder %s21, 1
      %p44 = por %p42, %p43
      %p46 = scmp.ne.s32.totalorder %s29, %s45
      %p47 = scmp.eq.s32.totalorder %s21, 0
      %p48 = por %p46, %p47
      %s50 = sadd.s32 %s49, 1
      %p53 = scmp.eq.s32.totalorder %s15, 1
      %p54 = scmp.ne.s32.totalorder %s49, %s51
      %p55 = scmp.eq.s32.totalorder %s15, 0
      %p56 = por %p54, %p55
      %p57 = scmp.ne.s32.totalorder %s49, %s51
      %p58 = scmp.eq.s32.totalorder %s20, 1
      %p59 = por %p57, %p58
      %p60 = scmp.ne.s32.totalorder %s51, %s52
      %p61 = scmp.eq.s32.totalorder %s20, 0
      %p62 = por %p60, %p61
      %p63 = scmp.ne.s32.totalorder %s51, %s52
      %p64 = scmp.eq.s32.totalorder %s21, 1
      %p65 = por %p63, %p64
      %p67 = scmp.ne.s32.totalorder %s52, %s66
      %p68 = scmp.eq.s32.totalorder %s21, 0
      %p69 = por %p67, %p68
      %s71 = sadd.s32 %s70, 1
      %p74 = scmp.eq.s32.totalorder %s15, 1
      %p75 = scmp.ne.s32.totalorder %s70, %s72
      %p76 = scmp.eq.s32.totalorder %s15, 0
      %p77 = por %p75, %p76
      %p78 = scmp.ne.s32.totalorder %s70, %s72
      %p79 = scmp.eq.s32.totalorder %s20, 1
      %p80 = por %p78, %p79
      %p81 = scmp.ne.s32.totalorder %s72, %s73
      %p82 = scmp.eq.s32.totalorder %s20, 0
      %p83 = por %p81, %p82
      %p84 = scmp.ne.s32.totalorder %s72, %s73
      %p85 = scmp.eq.s32.totalorder %s21, 1
      %p86 = por %p84, %p85
      %p88 = scmp.ne.s32.totalorder %s73, %s87
      %p89 = scmp.eq.s32.totalorder %s21, 0
      %p90 = por %p88, %p89
      %s91 = ssub.s32 %s15, %s22
      %p92 = scmp.eq.s32.totalorder %s91, 0
      %s94 = sadd.s32 %s93, 1
      %s95 = scalar_select %p92, %s93, %s94
      %p98 = pneg %p92
      %p99 = scmp.eq.s32.totalorder %s15, 1
      %p100 = por %p98, %p99
      %p101 = scmp.ne.s32.totalorder %s93, %s96
      %p102 = scmp.eq.s32.totalorder %s15, 0
      %p103 = por %p101, %p102
      %p104 = scmp.ne.s32.totalorder %s93, %s96
      %p105 = scmp.eq.s32.totalorder %s20, 1
      %p106 = por %p104, %p105
      %p107 = scmp.ne.s32.totalorder %s96, %s97
      %p108 = scmp.eq.s32.totalorder %s20, 0
      %p109 = por %p107, %p108
      %p110 = scmp.ne.s32.totalorder %s96, %s97
      %p111 = scmp.eq.s32.totalorder %s21, 1
      %p112 = por %p110, %p111
      %p114 = scmp.ne.s32.totalorder %s97, %s113
      %p115 = scmp.eq.s32.totalorder %s21, 0
      %p116 = por %p114, %p115
      %p117 = scmp.le.s32.totalorder 1, %s15
      %p118 = scmp.lt.s32.totalorder %s15, 3
      %p119 = pnand %p117, %p118
      %p120 = pneg %p119
      // Predicated region
      $region9: #{tpu_custom_call.1} parent=5 // pred_check
        _
      $region10: #{tpu_custom_call.1} parent=5 // pred_check_branch
        %122 = sbr.rel (%p119) target = $region12
      $region11: #{tpu_custom_call.1} parent=5 // pred_region
        %s123 = ssub.s32 %s15, 1
        // Predicated region
        $region13: #{tpu_custom_call.1} parent=11 // pred_check
          %p124 = pneg %p62
        $region14: #{tpu_custom_call.1} parent=11 // pred_check_branch
          %126 = sbr.rel (%p124) target = $region16
        $region15: #{tpu_custom_call.1} parent=11 // pred_region
          _
        $region16: #{tpu_custom_call.1} parent=11 // pred_fallthru
          _
        // Predicated region
        $region17: #{tpu_custom_call.1} parent=11 // pred_check
          %p127 = pneg %p83
        $region18: #{tpu_custom_call.1} parent=11 // pred_check_branch
          %129 = sbr.rel (%p127) target = $region20
        $region19: #{tpu_custom_call.1} parent=11 // pred_region
          _
        $region20: #{tpu_custom_call.1} parent=11 // pred_fallthru
          _
      $region12: #{tpu_custom_call.1} parent=5 // pred_fallthru
        _
      %p130 = scmp.lt.s32.totalorder %s15, 2
      // Predicated region
      $region21: #{tpu_custom_call.1} parent=5 // pred_check
        %p131 = pneg %p130
      $region22: #{tpu_custom_call.1} parent=5 // pred_check_branch
        %133 = sbr.rel (%p131) target = $region24
      $region23: #{tpu_custom_call.1} parent=5 // pred_region
        // Predicated region
        $region25: #{tpu_custom_call.1} parent=23 // pred_check
          %p134 = pneg %p35
        $region26: #{tpu_custom_call.1} parent=23 // pred_check_branch
          %136 = sbr.rel (%p134) target = $region28
        $region27: #{tpu_custom_call.1} parent=23 // pred_region
          %s137 = sand.u32 %s25, 1
          %s138 = scalar_lea.sflag [#allocation3], %s137
          %s139 = sand.u32 %s25, 1
          %s140 = smul.addr %s139, 8
          %s141 = scalar_lea.vmem [#allocation2], %s140
          %143 = vsyncadd %s138, 0
          %s144 = smul.addr %s15, 2
          %s145 = smul.addr %s144, 4
          %s146 = scalar_lea.hbm %s0, %s145
          %s148 = sshll.u32 %s146, 4
          %s149 = int_to_ptr.hbm [resolvable:$true] %s148
          %s150 = sshll.u32 %s141, 4
          %s151 = int_to_ptr.vmem [resolvable:$true] %s150
          %153 = dma.hbm_to_vmem [thread:$0]  %s149, 128, %s151, %s138
        $region28: #{tpu_custom_call.1} parent=23 // pred_fallthru
          _
      $region24: #{tpu_custom_call.1} parent=5 // pred_fallthru
        _
      %p154 = scmp.le.s32.totalorder 1, %s15
      %p155 = scmp.lt.s32.totalorder %s15, 3
      %p156 = pnand %p154, %p155
      %p157 = pneg %p156
      // Predicated region
      $region29: #{tpu_custom_call.1} parent=5 // pred_check
        _
      $region30: #{tpu_custom_call.1} parent=5 // pred_check_branch
        %159 = sbr.rel (%p156) target = $region32
      $region31: #{tpu_custom_call.1} parent=5 // pred_region
        %s160 = ssub.s32 %s15, 1
        %s161 = sand.u32 %s28, 1
        %s162 = scalar_lea.sflag [#allocation3], %s161
        %s163 = sand.u32 %s28, 1
        %s164 = smul.addr %s163, 8
        %s165 = scalar_lea.vmem [#allocation2], %s164
        // Predicated region
        $region33: #{tpu_custom_call.1} parent=31 // pred_check
          %p166 = pneg %p41
        $region34: #{tpu_custom_call.1} parent=31 // pred_check_branch
          %168 = sbr.rel (%p166) target = $region36
        $region35: #{tpu_custom_call.1} parent=31 // pred_region
          %170 = dma.done %s162, 128
        $region36: #{tpu_custom_call.1} parent=31 // pred_fallthru
          _
        %s171 = sand.u32 %s28, 1
        %s172 = scalar_lea.sflag [#allocation3], %s171
        %s173 = sand.u32 %s28, 1
        %s174 = smul.addr %s173, 8
        %s175 = scalar_lea.vmem [#allocation2], %s174
        %p176 = pneg %p41
        %p177 = pneg %p38
        %p178 = pneg %p62
        %p179 = pneg %p59
        %p180 = pneg %p83
        %p181 = pneg %p80
        %p182 = pneg %p109
        %p183 = pneg %p106
        %s184 = sand.u32 %s96, 1
        %s185 = scalar_lea.sflag [#allocation4], %s184
        %s186 = sand.u32 %s96, 1
        %s187 = smul.addr %s186, 16
        %s188 = scalar_lea.vmem [#allocation5], %s187
        %v189 = vld [vmem:[%s165] sm:$0xff]
        %191 = vst [vmem:[#allocation1] ss:$2 sm:$0xff] %v189
        %v192 = vld.sshfl [vmem:[#allocation1] sm:$0xff pattern:$0x75316420]
        %v193 = vld.sshfl [vmem:[#allocation1 + $0x8] sm:$0xff pattern:$0x75316420]
        %194 = vrot.lane.b32.xlu0 %v192, 64
        %v195 = vpop.permute.xlu0 %194
        %196 = vrot.lane.b32.xlu0 %v193, 64
        %v197 = vpop.permute.xlu0 %196
        %vm198 = vcmask 523264
        %v199 = vsel %vm198, %v195, %v197
        %v203 = vsel %vm198, 0.0, %v195
        %v204 = vsel %vm198, %v197, 0.0
        %v207 = vrot.slane %v203, 4
        %v208 = vrot.slane %v199, 4
        %v209 = vrot.slane %v204, 4
        %210 = vrot.lane.b32.xlu0 %v207, 112
        %v211 = vpop.permute.xlu0 %210
        %212 = vrot.lane.b32.xlu0 %v208, 112
        %v213 = vpop.permute.xlu0 %212
        %214 = vrot.lane.b32.xlu0 %v209, 112
        %v215 = vpop.permute.xlu0 %214
        %vm216 = vcmask 916480
        %v217 = vsel %vm216, %v211, %v213
        %v218 = vsel %vm216, %v213, %v215
        %221 = vrot.lane.b32.xlu0 %v203, 96
        %v222 = vpop.permute.xlu0 %221
        %223 = vrot.lane.b32.xlu0 %v199, 96
        %v224 = vpop.permute.xlu0 %223
        %225 = vrot.lane.b32.xlu0 %v204, 96
        %v226 = vpop.permute.xlu0 %225
        %vm227 = vcmask 785408
        %v228 = vsel %vm227, %v222, %v224
        %v229 = vsel %vm227, %v224, %v226
        %232 = vrot.lane.b32.xlu0 %v207, 80
        %v233 = vpop.permute.xlu0 %232
        %234 = vrot.lane.b32.xlu0 %v208, 80
        %v235 = vpop.permute.xlu0 %234
        %236 = vrot.lane.b32.xlu0 %v209, 80
        %v237 = vpop.permute.xlu0 %236
        %vm238 = vcmask 654336
        %v239 = vsel %vm238, %v233, %v235
        %v240 = vsel %vm238, %v235, %v237
        %243 = vrot.lane.b32.xlu0 %v203, 64
        %v244 = vpop.permute.xlu0 %243
        %245 = vrot.lane.b32.xlu0 %v199, 64
        %v246 = vpop.permute.xlu0 %245
        %247 = vrot.lane.b32.xlu0 %v204, 64
        %v248 = vpop.permute.xlu0 %247
        %v249 = vsel %vm198, %v244, %v246
        %v250 = vsel %vm198, %v246, %v248
        %253 = vrot.lane.b32.xlu0 %v207, 48
        %v254 = vpop.permute.xlu0 %253
        %255 = vrot.lane.b32.xlu0 %v208, 48
        %v256 = vpop.permute.xlu0 %255
        %257 = vrot.lane.b32.xlu0 %v209, 48
        %v258 = vpop.permute.xlu0 %257
        %vm259 = vcmask 392192
        %v260 = vsel %vm259, %v254, %v256
        %v261 = vsel %vm259, %v256, %v258
        %264 = vrot.lane.b32.xlu0 %v203, 32
        %v265 = vpop.permute.xlu0 %264
        %266 = vrot.lane.b32.xlu0 %v199, 32
        %v267 = vpop.permute.xlu0 %266
        %268 = vrot.lane.b32.xlu0 %v204, 32
        %v269 = vpop.permute.xlu0 %268
        %vm270 = vcmask 261120
        %v271 = vsel %vm270, %v265, %v267
        %v272 = vsel %vm270, %v267, %v269
        %275 = vrot.lane.b32.xlu0 %v207, 16
        %v276 = vpop.permute.xlu0 %275
        %277 = vrot.lane.b32.xlu0 %v208, 16
        %v278 = vpop.permute.xlu0 %277
        %279 = vrot.lane.b32.xlu0 %v209, 16
        %v280 = vpop.permute.xlu0 %279
        %vm281 = vcmask 130048
        %v282 = vsel %vm281, %v276, %v278
        %v283 = vsel %vm281, %v278, %v280
        %vm286 = vcmask 1043456
        %v287 = vsel %vm286, %v203, %v217
        %v288 = vsel %vm286, %v199, %v218
        %v289 = vsel %vm286, %v228, %v239
        %v290 = vsel %vm286, %v229, %v240
        %v291 = vsel %vm286, %v249, %v260
        %v292 = vsel %vm286, %v250, %v261
        %v293 = vsel %vm286, %v271, %v282
        %v294 = vsel %vm286, %v272, %v283
        %v295 = vld [vmem:[%s1] sm:$0xff]
        %v296 = vld [vmem:[%s2] sm:$0xff]
        %298 = vset.pattern.permute.xlu0 0
        %299 = vperm.xlu0 %298, %v296
        %v300 = vpop.permute.xlu0 %299
        %vm302 = vcmask 293888
        %v304 = vsel %vm302, %v295, 0
        %v306 = vsel %vm286, %v199, 0
        %v308 = vsel %vm286, %v204, 0
        %310 = vmatpush.msra.mxu0 0.0
        %311 = vmatpush.msra.mxu0 0.0
        %312 = vmatpush.msra.mxu0 0.0
        %313 = vmatpush.msra.mxu0 0.0
        %314 = vmatpush.msra.mxu0 0.0
        %315 = vmatpush.msra.mxu0 0.0
        %316 = vmatpush.msra.mxu0 0.0
        %317 = vmatpush.msra.mxu0 0.0
        %318 = vmatpush.msra.mxu0 0.0
        %319 = vmatpush.msra.mxu0 0.0
        %320 = vmatpush.msra.mxu0 0.0
        %321 = vmatpush.msra.mxu0 %v306
        %322 = vmatpush.msra.mxu0 %v293
        %323 = vmatpush.msra.mxu0 %v291
        %324 = vmatpush.msra.mxu0 %v289
        %325 = vmatpush.msra.mxu0 %v287
        %326 = vmatmul.f32.gmra.mxu0 %v304
        %v327 = vpop.f32.mrf.mxu0
        %v328 = vadd.f32 %v300, %v327
        %329 = vdwg.mxu0
        %330 = vmatpush.msra.mxu0 0.0
        %331 = vmatpush.msra.mxu0 0.0
        %332 = vmatpush.msra.mxu0 0.0
        %333 = vmatpush.msra.mxu0 0.0
        %334 = vmatpush.msra.mxu0 0.0
        %335 = vmatpush.msra.mxu0 0.0
        %336 = vmatpush.msra.mxu0 0.0
        %337 = vmatpush.msra.mxu0 0.0
        %338 = vmatpush.msra.mxu0 0.0
        %339 = vmatpush.msra.mxu0 0.0
        %340 = vmatpush.msra.mxu0 0.0
        %341 = vmatpush.msra.mxu0 %v308
        %342 = vmatpush.msra.mxu0 %v294
        %343 = vmatpush.msra.mxu0 %v292
        %344 = vmatpush.msra.mxu0 %v290
        %345 = vmatpush.msra.mxu0 %v288
        %346 = vmatmul.f32.gmra.mxu0 %v304
        %v347 = vpop.f32.mrf.mxu0
        %v348 = vadd.f32 %v300, %v347
        %349 = vdwg.mxu0
        %350 = vst [vmem:[%s188] sm:$0xff] %v328
        %351 = vst [vmem:[%s188 + $0x8] sm:$0xff] %v348
        %s352 = sand.u32 %s96, 1
        %s353 = scalar_lea.sflag [#allocation4], %s352
        %s354 = sand.u32 %s96, 1
        %s355 = smul.addr %s354, 16
        %s356 = scalar_lea.vmem [#allocation5], %s355
        // Predicated region
        $region37: #{tpu_custom_call.1} parent=31 // pred_check
          %p357 = pneg %p106
        $region38: #{tpu_custom_call.1} parent=31 // pred_check_branch
          %359 = sbr.rel (%p357) target = $region40
        $region39: #{tpu_custom_call.1} parent=31 // pred_region
          %361 = vsyncadd %s353, 0
          %s362 = smul.addr %s20, 2
          %s363 = smul.addr %s362, 8
          %s364 = scalar_lea.hbm %s3, %s363
          %s366 = sshll.u32 %s356, 4
          %s367 = int_to_ptr.vmem [resolvable:$true] %s366
          %s368 = sshll.u32 %s364, 4
          %s369 = int_to_ptr.hbm [resolvable:$true] %s368
          %371 = dma.vmem_to_hbm [thread:$0]  %s367, 256, %s369, %s353
        $region40: #{tpu_custom_call.1} parent=31 // pred_fallthru
          _
      $region32: #{tpu_custom_call.1} parent=5 // pred_fallthru
        _
      %p372 = scmp.le.s32.totalorder 2, %s15
      // Predicated region
      $region41: #{tpu_custom_call.1} parent=5 // pred_check
        %p373 = pneg %p372
      $region42: #{tpu_custom_call.1} parent=5 // pred_check_branch
        %375 = sbr.rel (%p373) target = $region44
      $region43: #{tpu_custom_call.1} parent=5 // pred_region
        %s376 = ssub.s32 %s15, 2
        // Predicated region
        $region45: #{tpu_custom_call.1} parent=43 // pred_check
          %p377 = pneg %p112
        $region46: #{tpu_custom_call.1} parent=43 // pred_check_branch
          %379 = sbr.rel (%p377) target = $region48
        $region47: #{tpu_custom_call.1} parent=43 // pred_region
          %s380 = sand.u32 %s97, 1
          %s381 = scalar_lea.sflag [#allocation4], %s380
          %s382 = sand.u32 %s97, 1
          %s383 = smul.addr %s382, 16
          %s384 = scalar_lea.vmem [#allocation5], %s383
          %386 = dma.done %s381, 256
        $region48: #{tpu_custom_call.1} parent=43 // pred_fallthru
          _
      $region44: #{tpu_custom_call.1} parent=5 // pred_fallthru
        _
    $region6: #{tpu_custom_call.1} parent=1 // loop_footer
      %s19 = sadd.s32 1, %s15
    $region7: #{tpu_custom_call.1} parent=1 // loop_footer_branch
      %14 = sbr.rel target = $region3
    $region8: #{tpu_custom_call.1} parent=1 // loop_exit
      _
    %387 = vsyncpa [#allocation3], 1
    %s388 = scalar_lea.sflag [#allocation3], 1
    %389 = vsyncpa %s388, 1
    %390 = vsyncpa [#allocation4], 1
    %s391 = scalar_lea.sflag [#allocation4], 1
    %392 = vsyncpa %s391, 1

</llo_original>
